<compile_context>
chip_gen: v5e
topology: v5e:2x2
jax: 0.10.0
libtpu: 0.0.40
codegen_flags: <defaults>
</compile_context>

<pallas_src>
import jax
import jax.numpy as jnp
from jax.experimental import pallas as pl
from jax.experimental.pallas import tpu as pltpu


def _round_up(x, m):
    return (x + m - 1) // m * m


def _choose_row_tile(n_rows, sublane, max_tm):
    """Pick a sublane-aligned row tile that minimises last-tile padding."""
    r_min = _round_up(n_rows, sublane)
    if r_min <= max_tm:
        return r_min, r_min  # single row tile, zero/near-zero waste
    best = None
    for cand in (max_tm, (max_tm * 3) // 4, max_tm // 2, max_tm // 4, 128, 64):
        tm = _round_up(min(cand, max_tm), sublane)
        if tm < sublane:
            continue
        r_pad = _round_up(n_rows, tm)
        key = (r_pad - n_rows, -tm)  # least waste, then largest tile
        if best is None or key < best[0]:
            best = (key, tm, r_pad)
    return best[1], best[2]


# ----------------------------------------------------------------------------
# Kernels
# ----------------------------------------------------------------------------
def _matmul_bias_single_k_kernel(x_ref, w_ref, b_ref, o_ref):
    # x_ref: (tm, K)   row tile of collapsed activations
    # w_ref: (K, tn)   VMEM-resident (constant index_map) pre-transposed weight
    # b_ref: (1, tn)   bias tile (f32)
    # o_ref: (tm, tn)  output tile
    acc = jnp.dot(x_ref[...], w_ref[...], preferred_element_type=jnp.float32)
    o_ref[...] = (acc + b_ref[...]).astype(o_ref.dtype)


def _matmul_bias_acc_kernel(x_ref, w_ref, b_ref, o_ref, acc_ref):
    # K-tiled fallback: bias folded into the accumulator init at k == 0.
    k = pl.program_id(2)

    @pl.when(k == 0)
    def _():
        acc_ref[...] = jnp.broadcast_to(b_ref[...], acc_ref.shape)

    acc_ref[...] += jnp.dot(
        x_ref[...], w_ref[...], preferred_element_type=jnp.float32
    )

    @pl.when(k == pl.num_programs(2) - 1)
    def _():
        o_ref[...] = acc_ref[...].astype(o_ref.dtype)


# ----------------------------------------------------------------------------
# Wrapper
# ----------------------------------------------------------------------------
def custom_linear(x, weight, bias, *, use_bf16=False, weight_is_transposed=False):
    """x: (P, M, dim_in); weight: (dim_out, dim_in) (or (dim_in, dim_out) when
    weight_is_transposed=True); bias: (dim_out,).

    Returns stacked result (P, M, dim_out) == stack([x[i] @ W.T + b]).

    use_bf16: cast MXU inputs to bf16 (f32 accumulation) for higher throughput;
    keep False when f32 bit-accuracy vs. the PyTorch module is required.
    weight_is_transposed: pass a cached (dim_in, dim_out) weight to avoid the
    per-call HBM transpose pass.
    """
    P, M, dim_in = x.shape
    if weight_is_transposed:
        w_t = weight
        dim_out = weight.shape[1]
    else:
        # TODO(synk): cache W.T outside the hot path (it is a parameter) so this
        # HBM pass is paid once per training step, not once per call.
        w_t = weight.T
        dim_out = weight.shape[0]
    out_dtype = x.dtype

    # Particles collapsed into rows (shared weight -> just more LHS rows).
    R = P * M
    x2 = x.reshape(R, dim_in)

    compute_dtype = jnp.bfloat16 if use_bf16 else x.dtype
    x_bytes = jnp.dtype(compute_dtype).itemsize
    w_bytes = x_bytes
    o_bytes = jnp.dtype(out_dtype).itemsize
    sub = 16 if x_bytes == 2 else 8  # sublane granularity for the row dim

    # Lane (last-dim) padding only; skipped when dims are already 128-aligned.
    k_pad = _round_up(dim_in, 128)
    n_pad = _round_up(dim_out, 128)

    def pad2(a, r_to, c_to):
        r, c = a.shape
        if r == r_to and c == c_to:
            return a
        return jnp.pad(a, ((0, r_to - r), (0, c_to - c)))

    flops = 2 * R * dim_in * dim_out
    bytes_accessed = (
        R * dim_in * x_bytes
        + dim_in * dim_out * w_bytes
        + dim_out * 4
        + R * dim_out * o_bytes
    )
    cost = pl.CostEstimate(
        flops=flops, transcendentals=0, bytes_accessed=bytes_accessed
    )

    # Fast path: whole K in one tile and whole weight VMEM-resident.
    single_k = (k_pad <= 2048) and (k_pad * n_pad * w_bytes <= 8 * 2**20)

    if single_k:
        tm, r_pad = _choose_row_tile(R, sub, max_tm=512)

        def footprint(tm_):
            return (
                2 * tm_ * k_pad * x_bytes        # double-buffered x tiles
                + 2 * k_pad * n_pad * w_bytes    # resident weight (budget 2x)
                + 2 * tm_ * n_pad * o_bytes      # double-buffered out tiles
                + n_pad * 4                      # bias
            )

        while tm > sub and footprint(tm) > 24 * 2**20:
            tm = max(sub, _round_up(tm // 2, sub))
            r_pad = _round_up(R, tm)
        rt = r_pad // tm

        # Give the v7x megacore >=2 parallel steps when it costs nothing
        # (single row tile -> each weight half is still DMA'd exactly once).
        if rt == 1 and n_pad % 256 == 0:
            tn = n_pad // 2
        else:
            tn = n_pad
        nt = n_pad // tn

        xp = pad2(x2, r_pad, k_pad).astype(compute_dtype)
        wp = pad2(w_t, k_pad, n_pad).astype(compute_dtype)
        bp = pad2(bias.astype(jnp.float32).reshape(1, dim_out), 1, n_pad)

        vmem_limit = int(min(max(2 * footprint(tm), 32 * 2**20), 48 * 2**20))

        out_padded = pl.pallas_call(
            _matmul_bias_single_k_kernel,
            out_shape=jax.ShapeDtypeStruct((r_pad, n_pad), out_dtype),
            grid_spec=pltpu.PrefetchScalarGridSpec(
                num_scalar_prefetch=0,
                grid=(rt, nt),
                in_specs=[
                    pl.BlockSpec((tm, k_pad), lambda i, j: (i, 0)),
                    pl.BlockSpec((k_pad, tn), lambda i, j: (0, j)),
                    pl.BlockSpec((1, tn), lambda i, j: (0, j)),
                ],
                out_specs=pl.BlockSpec((tm, tn), lambda i, j: (i, j)),
            ),
            compiler_params=pltpu.CompilerParams(
                dimension_semantics=("parallel", "parallel"),
                vmem_limit_bytes=vmem_limit,
            ),
            cost_estimate=cost,
        )(xp, wp, bp)
    else:
        # K-tiled fallback for very large dim_in / dim_out.
        tm, r_pad = _choose_row_tile(R, sub, max_tm=256)
        tn = 512 if n_pad % 512 == 0 else (256 if n_pad % 256 == 0 else 128)
        tk = (
            1024 if k_pad % 1024 == 0
            else 512 if k_pad % 512 == 0
            else 256 if k_pad % 256 == 0
            else 128
        )
        rt, nt, kt = r_pad // tm, n_pad // tn, k_pad // tk

        xp = pad2(x2, r_pad, k_pad).astype(compute_dtype)
        wp = pad2(w_t, k_pad, n_pad).astype(compute_dtype)
        bp = pad2(bias.astype(jnp.float32).reshape(1, dim_out), 1, n_pad)

        footprint = (
            2 * tm * tk * x_bytes
            + 2 * tk * tn * w_bytes
            + 2 * tm * tn * o_bytes
            + tm * tn * 4
            + tn * 4
        )
        vmem_limit = int(min(max(2 * footprint, 32 * 2**20), 48 * 2**20))

        out_padded = pl.pallas_call(
            _matmul_bias_acc_kernel,
            out_shape=jax.ShapeDtypeStruct((r_pad, n_pad), out_dtype),
            grid_spec=pltpu.PrefetchScalarGridSpec(
                num_scalar_prefetch=0,
                grid=(rt, nt, kt),
                in_specs=[
                    pl.BlockSpec((tm, tk), lambda i, j, k: (i, k)),
                    pl.BlockSpec((tk, tn), lambda i, j, k: (k, j)),
                    pl.BlockSpec((1, tn), lambda i, j, k: (0, j)),
                ],
                out_specs=pl.BlockSpec((tm, tn), lambda i, j, k: (i, j)),
                scratch_shapes=[pltpu.VMEM((tm, tn), jnp.float32)],
            ),
            compiler_params=pltpu.CompilerParams(
                dimension_semantics=("parallel", "parallel", "arbitrary"),
                vmem_limit_bytes=vmem_limit,
            ),
            cost_estimate=cost,
        )(xp, wp, bp)

    # Strip padding, restore the particle axis.
    return out_padded[:R, :dim_out].reshape(P, M, dim_out)


def custom_linear_as_list(x, weight, bias, **kwargs):
    """Mirrors the PyTorch module exactly: a list with one entry per particle.

    Unstacking happens only at this API boundary; the kernel runs once on the
    fused (P*M, dim_in) problem.
    """
    out = custom_linear(x, weight, bias, **kwargs)
    return list(out)


if __name__ == "__main__":
    # Small shapes consistent with the module's forward.
    num_particles = 3
    tokens = 8
    dim_in = 32
    dim_out = 64

    key = jax.random.PRNGKey(0)
    k_x, k_w = jax.random.split(key)

    # weight ~ randn(dim_out, dim_in), bias = zeros(dim_out) (as in __init__)
    weight = jax.random.normal(k_w, (dim_out, dim_in), dtype=jnp.float32)
    bias = jnp.zeros((dim_out,), dtype=jnp.float32)
    x = jax.random.normal(
        k_x, (num_particles, tokens, dim_in), dtype=jnp.float32
    )

    # f32 path (matches the PyTorch module numerically).
    outs = custom_linear_as_list(x, weight, bias)
    for o in outs:
        jax.block_until_ready(o)

    ref = [x[i] @ weight.T + bias for i in range(num_particles)]
    for o, r in zip(outs, ref):
        assert o.shape == (tokens, dim_out)
        assert jnp.allclose(o, r, atol=1e-4, rtol=1e-4)

    # bf16 fast path (f32 accumulation) — loose tolerance by construction.
    out_bf16 = custom_linear(x, weight, bias, use_bf16=True)
    jax.block_until_ready(out_bf16)
    assert jnp.allclose(out_bf16, jnp.stack(ref), atol=0.5, rtol=0.1)

    print("KERNEL_OK")
</pallas_src>

<mosaic_0001>
module attributes {stable_mosaic.version = 11 : i64} {
  func.func @_matmul_bias_single_k_kernel(%arg0: i32, %arg1: i32, %arg2: memref<24x128xf32, #tpu.memory_space<vmem>>, %arg3: memref<128x128xf32, #tpu.memory_space<vmem>>, %arg4: memref<1x128xf32, #tpu.memory_space<vmem>>, %arg5: memref<24x128xf32, #tpu.memory_space<vmem>>) attributes {dimension_semantics = [#tpu.dimension_semantics<parallel>, #tpu.dimension_semantics<parallel>], iteration_bounds = array<i64: 1, 1>, scalar_prefetch = 0 : i64, scratch_operands = 0 : i64, tpu.core_type = #tpu.core_type<tc>, window_params = [{transform_indices = @transform_0, window_bounds = array<i64: 24, 128>}, {transform_indices = @transform_1, window_bounds = array<i64: 128, 128>}, {transform_indices = @transform_2, window_bounds = array<i64: 1, 128>}, {transform_indices = @transform_3, window_bounds = array<i64: 24, 128>}]} {
    %c0 = arith.constant 0 : index
    %c0_0 = arith.constant 0 : index
    %0 = vector.load %arg2[%c0, %c0_0] : memref<24x128xf32, #tpu.memory_space<vmem>>, vector<24x128xf32>
    %c0_1 = arith.constant 0 : index
    %c0_2 = arith.constant 0 : index
    %1 = vector.load %arg3[%c0_1, %c0_2] : memref<128x128xf32, #tpu.memory_space<vmem>>, vector<128x128xf32>
    %cst = arith.constant dense<0.000000e+00> : vector<24x128xf32>
    %2 = tpu.matmul %0, %1, %cst {dimension_numbers = #tpu.dot_dimension_numbers<[1], [0], [0], [1], [0, 0, 1, 1], [], []>} : vector<24x128xf32>, vector<128x128xf32>, vector<24x128xf32> -> vector<24x128xf32>
    %c0_3 = arith.constant 0 : index
    %c0_4 = arith.constant 0 : index
    %3 = vector.load %arg4[%c0_3, %c0_4] : memref<1x128xf32, #tpu.memory_space<vmem>>, vector<1x128xf32>
    %4 = vector.broadcast %3 : vector<1x128xf32> to vector<24x128xf32>
    %5 = arith.addf %2, %4 : vector<24x128xf32>
    %c0_5 = arith.constant 0 : index
    %c0_6 = arith.constant 0 : index
    %6 = vector.load %arg5[%c0_5, %c0_6] : memref<24x128xf32, #tpu.memory_space<vmem>>, vector<24x128xf32>
    tpu.vector_store %arg5[%c0_5, %c0_6], %5 {strides = array<i32>} : memref<24x128xf32, #tpu.memory_space<vmem>>, vector<24x128xf32>,
    return
  }
  func.func @transform_0(%arg0: i32, %arg1: i32) -> (i32, i32) {
    %c0_i32 = arith.constant 0 : i32
    %c0_i32_0 = arith.constant 0 : i32
    return %arg0, %c0_i32 : i32, i32
  }
  func.func @transform_1(%arg0: i32, %arg1: i32) -> (i32, i32) {
    %c0_i32 = arith.constant 0 : i32
    %c0_i32_0 = arith.constant 0 : i32
    return %c0_i32, %arg1 : i32, i32
  }
  func.func @transform_2(%arg0: i32, %arg1: i32) -> (i32, i32) {
    %c0_i32 = arith.constant 0 : i32
    %c0_i32_0 = arith.constant 0 : i32
    return %c0_i32, %arg1 : i32, i32
  }
  func.func @transform_3(%arg0: i32, %arg1: i32) -> (i32, i32) {
    %c0_i32 = arith.constant 0 : i32
    return %arg0, %arg1 : i32, i32
  }
}

</mosaic_0001>

<llo_original>
// kernel: tpu_custom_call.1
$region0: #{tpu_custom_call.1}
  #allocation0 [shape = 'u32[]', space=smem, size = 0x4, offset = 0x4, fixed_abs, tag = 'smem constant byte address 0x4 - core index']
  #allocation1 [shape = 'u32[72,128]{1,0:T(1,128)}', space=vmem, size = 0x9000, scoped, tag = 'internal scratch']
  %s0 = inlined_call_operand.hbm [shape: f32[24,128], index: 0, kind: input, shape index: {}]
  %s1 = inlined_call_operand.hbm [shape: f32[128,128], index: 1, kind: input, shape index: {}]
  %s2 = inlined_call_operand.vmem [shape: f32[1,128], index: 2, kind: input, shape index: {}]
  %s3 = inlined_call_operand.hbm [shape: f32[24,128], index: 3, kind: output, shape index: {}]
  %s4 = sld [smem:[#allocation0]]
  $region30: #{tpu_custom_call.1} parent=0
    _
  %s6 = ssub.s32 1, %s4
  %s7 = scalar_select 0, %s6, %s4
  $region1: #{tpu_custom_call.1} parent=0
    #allocation2 [shape = 'u8[12288]{0}', space=vmem, size = 0x3000, scoped, tag = 'input window, operand 0, single buffered']
    #allocation3 [shape = 's32[1]{0}', space=sflag, size = 0x4, scoped, tag = 'scoped memory for tpu_custom_call.1']
    #allocation4 [shape = 's32[1]{0}', space=sflag, size = 0x4, scoped, tag = 'scoped memory for tpu_custom_call.1']
    #allocation5 [shape = 'u8[65536]{0}', space=vmem, size = 0x10000, scoped, tag = 'input window, operand 1, single buffered']
    #allocation6 [shape = 's32[1]{0}', space=sflag, size = 0x4, scoped, tag = 'scoped memory for tpu_custom_call.1']
    #allocation7 [shape = 'u8[12288]{0}', space=vmem, size = 0x3000, scoped, tag = 'output window, operand 0, single buffered']
    %8 = vsyncpa [#allocation3], 0
    %9 = vsyncpa [#allocation6], 0
    %10 = vsyncpa [#allocation4], 0
    // Predicated region
    $region2: #{tpu_custom_call.1} parent=1 // pred_check
      _
    $region3: #{tpu_custom_call.1} parent=1 // pred_check_branch
      %12 = sbr.rel (0) target = $region5
    $region4: #{tpu_custom_call.1} parent=1 // pred_region
      %14 = vsyncadd [#allocation3], 0
      %s15 = sshll.u32 %s0, 4
      %s16 = int_to_ptr.hbm [resolvable:$true] %s15
      %s17 = sshll.u32 [#allocation2], 4
      %s18 = int_to_ptr.vmem [resolvable:$true] %s17
      %23 = dma.hbm_to_vmem [thread:$0]  %s16, 384, %s18, [#allocation3], 128, 128, 8
    $region5: #{tpu_custom_call.1} parent=1 // pred_fallthru
      _
    // Predicated region
    $region6: #{tpu_custom_call.1} parent=1 // pred_check
      _
    $region7: #{tpu_custom_call.1} parent=1 // pred_check_branch
      %25 = sbr.rel (0) target = $region9
    $region8: #{tpu_custom_call.1} parent=1 // pred_region
      %27 = vsyncadd [#allocation6], 0
      %s28 = sshll.u32 %s1, 4
      %s29 = int_to_ptr.hbm [resolvable:$true] %s28
      %s30 = sshll.u32 [#allocation5], 4
      %s31 = int_to_ptr.vmem [resolvable:$true] %s30
      %36 = dma.hbm_to_vmem [thread:$0]  %s29, 2048, %s31, [#allocation6], 128, 128, 8
    $region9: #{tpu_custom_call.1} parent=1 // pred_fallthru
      _
    // Predicated region
    $region10: #{tpu_custom_call.1} parent=1 // pred_check
      _
    $region11: #{tpu_custom_call.1} parent=1 // pred_check_branch
      %38 = sbr.rel (0) target = $region13
    $region12: #{tpu_custom_call.1} parent=1 // pred_region
      _
    $region13: #{tpu_custom_call.1} parent=1 // pred_fallthru
      _
    // Predicated region
    $region14: #{tpu_custom_call.1} parent=1 // pred_check
      _
    $region15: #{tpu_custom_call.1} parent=1 // pred_check_branch
      %40 = sbr.rel (0) target = $region17
    $region16: #{tpu_custom_call.1} parent=1 // pred_region
      %42 = dma.done [#allocation3], 384
    $region17: #{tpu_custom_call.1} parent=1 // pred_fallthru
      _
    // Predicated region
    $region18: #{tpu_custom_call.1} parent=1 // pred_check
      _
    $region19: #{tpu_custom_call.1} parent=1 // pred_check_branch
      %44 = sbr.rel (0) target = $region21
    $region20: #{tpu_custom_call.1} parent=1 // pred_region
      %46 = dma.done [#allocation6], 2048
    $region21: #{tpu_custom_call.1} parent=1 // pred_fallthru
      _
    %v47 = vld [vmem:[#allocation2] sm:$0xff]
    %v48 = vld [vmem:[#allocation2 + $0x8] sm:$0xff]
    %v49 = vld [vmem:[#allocation2 + $0x10] sm:$0xff]
    %v50 = vld [vmem:[#allocation5] sm:$0xff]
    %v51 = vld [vmem:[#allocation5 + $0x8] sm:$0xff]
    %v52 = vld [vmem:[#allocation5 + $0x10] sm:$0xff]
    %v53 = vld [vmem:[#allocation5 + $0x18] sm:$0xff]
    %v54 = vld [vmem:[#allocation5 + $0x20] sm:$0xff]
    %v55 = vld [vmem:[#allocation5 + $0x28] sm:$0xff]
    %v56 = vld [vmem:[#allocation5 + $0x30] sm:$0xff]
    %v57 = vld [vmem:[#allocation5 + $0x38] sm:$0xff]
    %v58 = vld [vmem:[#allocation5 + $0x40] sm:$0xff]
    %v59 = vld [vmem:[#allocation5 + $0x48] sm:$0xff]
    %v60 = vld [vmem:[#allocation5 + $0x50] sm:$0xff]
    %v61 = vld [vmem:[#allocation5 + $0x58] sm:$0xff]
    %v62 = vld [vmem:[#allocation5 + $0x60] sm:$0xff]
    %v63 = vld [vmem:[#allocation5 + $0x68] sm:$0xff]
    %v64 = vld [vmem:[#allocation5 + $0x70] sm:$0xff]
    %v65 = vld [vmem:[#allocation5 + $0x78] sm:$0xff]
    %v66 = vld [vmem:[%s2] sm:$0x1]
    %v68 = vperm.slane %v66, 0
    %70 = vmatpush.msra.mxu0 %v65
    %71 = vmatpush.msra.mxu0 %v64
    %72 = vmatpush.msra.mxu0 %v63
    %73 = vmatpush.msra.mxu0 %v62
    %74 = vmatpush.msra.mxu0 %v61
    %75 = vmatpush.msra.mxu0 %v60
    %76 = vmatpush.msra.mxu0 %v59
    %77 = vmatpush.msra.mxu0 %v58
    %78 = vmatpush.msra.mxu0 %v57
    %79 = vmatpush.msra.mxu0 %v56
    %80 = vmatpush.msra.mxu0 %v55
    %81 = vmatpush.msra.mxu0 %v54
    %82 = vmatpush.msra.mxu0 %v53
    %83 = vmatpush.msra.mxu0 %v52
    %84 = vmatpush.msra.mxu0 %v51
    %85 = vmatpush.msra.mxu0 %v50
    %86 = vmatmul.f32.gmra.mxu0 %v47
    %v87 = vpop.f32.mrf.mxu0
    %v88 = vadd.f32 %v68, %v87
    %89 = vmatmul.f32.gmra.mxu0 %v48
    %v90 = vpop.f32.mrf.mxu0
    %v91 = vadd.f32 %v68, %v90
    %92 = vmatmul.f32.gmra.mxu0 %v49
    %v93 = vpop.f32.mrf.mxu0
    %v94 = vadd.f32 %v68, %v93
    %95 = vdwg.mxu0
    %96 = vst [vmem:[#allocation7] sm:$0xff] %v88
    %97 = vst [vmem:[#allocation7 + $0x8] sm:$0xff] %v91
    %98 = vst [vmem:[#allocation7 + $0x10] sm:$0xff] %v94
    // Predicated region
    $region22: #{tpu_custom_call.1} parent=1 // pred_check
      _
    $region23: #{tpu_custom_call.1} parent=1 // pred_check_branch
      %100 = sbr.rel (0) target = $region25
    $region24: #{tpu_custom_call.1} parent=1 // pred_region
      %102 = vsyncadd [#allocation4], 0
      %s103 = sshll.u32 [#allocation7], 4
      %s104 = int_to_ptr.vmem [resolvable:$true] %s103
      %s105 = sshll.u32 %s3, 4
      %s106 = int_to_ptr.hbm [resolvable:$true] %s105
      %111 = dma.vmem_to_hbm [thread:$0]  %s104, 384, %s106, [#allocation4], 128, 128, 8
    $region25: #{tpu_custom_call.1} parent=1 // pred_fallthru
      _
    // Predicated region
    $region26: #{tpu_custom_call.1} parent=1 // pred_check
      _
    $region27: #{tpu_custom_call.1} parent=1 // pred_check_branch
      %113 = sbr.rel (0) target = $region29
    $region28: #{tpu_custom_call.1} parent=1 // pred_region
      %115 = dma.done [#allocation4], 384
    $region29: #{tpu_custom_call.1} parent=1 // pred_fallthru
      _
    %116 = vsyncpa [#allocation3], 1
    %117 = vsyncpa [#allocation6], 1
    %118 = vsyncpa [#allocation4], 1

</llo_original>
